<compile_context>
chip_gen: v5e
topology: v5e:2x2
jax: 0.10.0
libtpu: 0.0.40
codegen_flags: <defaults>
</compile_context>

<pallas_src>
import functools

import jax
import jax.numpy as jnp
from jax import lax
from jax.experimental import pallas as pl
from jax.experimental.pallas import tpu as pltpu


# ------------------------------ fused kernel ------------------------------- #

def _encoder_kernel(x_ref, w1_ref, b1_ref, w2_ref, b2_ref, w3_ref, b3_ref,
                    rw1_ref, rw2_ref, o_ref, s1, s2, s3,
                    *, Bt, P0, P1, P2, O1, O2, O3, n_res):
    f32 = jnp.float32

    def row_mask(M, R, O):
        # True on rows whose per-element position s = r % R lies in [1, O]
        # (valid conv outputs); False on junk rows, which double as the next
        # layer's zero padding once masked to 0.
        r = lax.broadcasted_iota(jnp.int32, (M, 1), 0)
        s = lax.rem(r, R)
        return jnp.logical_and(s >= 1, s <= O)

    def conv_s2(src, w_ref, b_ref, P, O, K):
        """Stride-2, pad-1, kernel-K conv over a flat padded slab.

        src rows: [z, z, elem0 padded slab (P rows), elem1 padded slab, ...].
        The two leading zero rows make every tap a plain strided load:
            tap_k[r] = src[k + 2r] = padded_row(2r + k - 2)
        so output row r holds element r // (P//2), position (r % (P//2)) - 1.
        One im2col lane-concat + ONE MXU matmul per conv (perf review).
        """
        R = P // 2
        M = Bt * R
        taps = [src[pl.ds(k, M, stride=2), :] for k in range(K)]
        col = jnp.concatenate(taps, axis=-1)                 # (M, K*Cin) im2col
        y = jnp.dot(col, w_ref[...], preferred_element_type=f32) + b_ref[...]
        return jnp.where(row_mask(M, R, O), y, 0.0)

    M3 = Bt * (P2 // 2)                                      # = Bt * (O3 + 2)

    # Zero ONLY the tiny lead/halo rows (6 rows total).  Interior rows are fully
    # overwritten by the masked activation stores; full-buffer zeroing removed.
    s1[0:2, :] = jnp.zeros((2, s1.shape[1]), f32)
    s2[0:2, :] = jnp.zeros((2, s2.shape[1]), f32)
    s3[0:1, :] = jnp.zeros((1, s3.shape[1]), f32)
    s3[M3 + 1:M3 + 2, :] = jnp.zeros((1, s3.shape[1]), f32)

    # ---- conv_1 (k=4, s=2, p=1) + tanh : input arrives pre-padded/flat ----
    y1 = conv_s2(x_ref, w1_ref, b1_ref, P0, O1, 4)           # (Bt*P1, C1)
    s1[2:, :] = jnp.tanh(y1)                                 # one contiguous store

    # ---- conv_2 (k=4, s=2, p=1) + tanh ----
    y2 = conv_s2(s1, w2_ref, b2_ref, P1, O2, 4)              # (Bt*P2, C)
    s2[2:, :] = jnp.tanh(y2)

    # ---- conv_3 (k=3, s=2, p=1), no activation before the residual stack ----
    x3 = conv_s2(s2, w3_ref, b3_ref, P2, O3, 3)              # (M3, C), zero halos

    mask3 = row_mask(M3, P2 // 2, O3)

    # ---- residual stack: x += conv1x1(tanh(conv3(tanh(x)))) ; final tanh ----
    # Per layer: one store of tanh(x) + two shifted contiguous loads build the
    # (M3, 3*C) im2col slab -> ONE matmul (instead of 3) per residual conv3.
    # n_res is small here; use lax.fori_loop(unroll=...) if it grows past ~4.
    for i in range(n_res):
        h = jnp.tanh(x3)                                     # halo rows stay 0
        s3[1:1 + M3, :] = h
        col = jnp.concatenate(
            [s3[0:M3, :], h, s3[2:2 + M3, :]], axis=-1)      # taps k=0,1,2
        mid = jnp.tanh(jnp.dot(col, rw1_ref[i], preferred_element_type=f32))
        delta = jnp.dot(mid, rw2_ref[i], preferred_element_type=f32)
        x3 = x3 + jnp.where(mask3, delta, 0.0)               # keep halos exact 0

    o_ref[...] = jnp.tanh(x3).astype(o_ref.dtype)            # F.tanh of ResidualStack


# ------------------------------ forward wrapper ----------------------------- #

def _pick_bt(B, cap):
    bt = min(B, cap)
    while B % bt:
        bt -= 1
    return bt


def encoder_forward_pallas(prep, x_ncw, *, bt_cap=64):
    """prep: prepared (kernel-layout) params.  x_ncw: (B, Cin, L).  -> (B, C, L//8)."""
    B, Cin, L = x_ncw.shape
    assert L % 8 == 0, "three stride-2 convs assume L divisible by 8"
    C1 = prep["w1"].shape[1]
    C = prep["w3"].shape[1]
    n_res = prep["rw2"].shape[0]

    O1, O2, O3 = L // 2, L // 4, L // 8
    # Per-element padded slab lengths; halve each layer so that each conv's
    # masked output IS the next layer's padded slab (contiguous store).
    P0 = L + 16
    P1, P2 = P0 // 2, P0 // 4
    R3 = P2 // 2                                             # = O3 + 2

    # Bt: fold batch elements per grid step (dominant perf lever).  Capped so the
    # folded blocks stay far below VMEM limits (matters on v7x's 64 MiB) and so
    # multi-step grids keep both v7x TensorCores fed via the 'parallel' axis.
    Bt = _pick_bt(B, bt_cap)
    grid = (B // Bt,)

    # One fused layout-prep copy: NCW -> channel-last, per-element zero padding
    # for all stride-2 convs, flattened per grid step with 2 lead zero rows.
    x_blc = jnp.transpose(x_ncw, (0, 2, 1))                  # (B, L, Cin)
    xp = jnp.pad(x_blc, ((0, 0), (1, P0 - L - 1), (0, 0)))   # (B, P0, Cin)
    xp = xp.reshape(B // Bt, Bt * P0, Cin)
    xp = jnp.pad(xp, ((0, 0), (2, 0), (0, 0)))               # (B//Bt, 2+Bt*P0, Cin)

    kern = functools.partial(_encoder_kernel, Bt=Bt, P0=P0, P1=P1, P2=P2,
                             O1=O1, O2=O2, O3=O3, n_res=n_res)

    out = pl.pallas_call(
        kern,
        out_shape=jax.ShapeDtypeStruct((B // Bt, Bt * R3, C), jnp.float32),
        grid=grid,
        in_specs=[
            pl.BlockSpec((None, 2 + Bt * P0, Cin), lambda b: (b, 0, 0)),
            pl.BlockSpec(prep["w1"].shape, lambda b: (0, 0)),
            pl.BlockSpec(prep["b1"].shape, lambda b: (0, 0)),
            pl.BlockSpec(prep["w2"].shape, lambda b: (0, 0)),
            pl.BlockSpec(prep["b2"].shape, lambda b: (0, 0)),
            pl.BlockSpec(prep["w3"].shape, lambda b: (0, 0)),
            pl.BlockSpec(prep["b3"].shape, lambda b: (0, 0)),
            pl.BlockSpec(prep["rw1"].shape, lambda b: (0, 0, 0)),
            pl.BlockSpec(prep["rw2"].shape, lambda b: (0, 0, 0)),
        ],
        out_specs=pl.BlockSpec((None, Bt * R3, C), lambda b: (b, 0, 0)),
        scratch_shapes=[
            pltpu.VMEM((2 + Bt * P1, C1), jnp.float32),      # tanh(conv1), padded
            pltpu.VMEM((2 + Bt * P2, C), jnp.float32),       # tanh(conv2), padded
            pltpu.VMEM((2 + Bt * R3, C), jnp.float32),       # tanh(x) taps (residual)
        ],
        compiler_params=pltpu.CompilerParams(dimension_semantics=("parallel",)),
    )(xp, prep["w1"], prep["b1"], prep["w2"], prep["b2"],
      prep["w3"], prep["b3"], prep["rw1"], prep["rw2"])

    out = out.reshape(B, R3, C)[:, 1:1 + O3, :]              # drop halo rows
    return jnp.transpose(out, (0, 2, 1))                     # PyTorch (B, C, L_out)


# ------------------------------ parameter init ------------------------------ #

def init_encoder_params(key, in_channels, num_hiddens, num_residual_layers,
                        num_residual_hiddens):
    """Deterministic synthetic parameters in PyTorch layout (Cout, Cin, K)."""
    n_keys = 6 + 2 * num_residual_layers
    ks = list(jax.random.split(key, n_keys))

    def conv_w(k, cout, cin, ksz):
        scale = 1.0 / jnp.sqrt(jnp.float32(cin * ksz))
        return scale * jax.random.normal(k, (cout, cin, ksz), jnp.float32)

    def conv_b(k, cout):
        return 0.05 * jax.random.normal(k, (cout,), jnp.float32)

    params = {
        "conv1_w": conv_w(ks[0], num_hiddens // 2, in_channels, 4),
        "conv1_b": conv_b(ks[1], num_hiddens // 2),
        "conv2_w": conv_w(ks[2], num_hiddens, num_hiddens // 2, 4),
        "conv2_b": conv_b(ks[3], num_hiddens),
        "conv3_w": conv_w(ks[4], num_hiddens, num_hiddens, 3),
        "conv3_b": conv_b(ks[5], num_hiddens),
        "res": [],
    }
    for i in range(num_residual_layers):
        w1 = conv_w(ks[6 + 2 * i], num_residual_hiddens, num_hiddens, 3)  # bias=False
        w2 = conv_w(ks[7 + 2 * i], num_hiddens, num_residual_hiddens, 1)  # bias=False
        params["res"].append((w1, w2))
    return params


def _im2col_w(w_oik):
    # PyTorch (Cout, Cin, K) -> im2col (K*Cin, Cout), tap-major rows.
    cout, cin, k = w_oik.shape
    return jnp.transpose(w_oik, (2, 1, 0)).reshape(k * cin, cout)


def prepare_params(params):
    """One-time weight re-layout for the im2col kernel (hoisted out of forward)."""
    prep = {
        "w1": _im2col_w(params["conv1_w"]), "b1": params["conv1_b"].reshape(1, -1),
        "w2": _im2col_w(params["conv2_w"]), "b2": params["conv2_b"].reshape(1, -1),
        "w3": _im2col_w(params["conv3_w"]), "b3": params["conv3_b"].reshape(1, -1),
    }
    if params["res"]:
        prep["rw1"] = jnp.stack([_im2col_w(w1) for w1, _ in params["res"]], 0)
        prep["rw2"] = jnp.stack([_im2col_w(w2) for _, w2 in params["res"]], 0)
    else:
        # Zero-weight dummy layer is a semantic no-op (x + 0*... == x).
        C = params["conv3_w"].shape[0]
        prep["rw1"] = jnp.zeros((1, 3 * C, 1), jnp.float32)
        prep["rw2"] = jnp.zeros((1, 1, C), jnp.float32)
    return prep


# ------------------------------ pure-JAX reference -------------------------- #

def encoder_forward_ref(params, x_ncw):
    def conv(x, w, b, stride, pad):
        out = lax.conv_general_dilated(x, w, (stride,), [(pad, pad)],
                                       dimension_numbers=("NCH", "OIH", "NCH"))
        if b is not None:
            out = out + b[None, :, None]
        return out

    x = jnp.tanh(conv(x_ncw, params["conv1_w"], params["conv1_b"], 2, 1))
    x = jnp.tanh(conv(x, params["conv2_w"], params["conv2_b"], 2, 1))
    x = conv(x, params["conv3_w"], params["conv3_b"], 2, 1)
    for w1, w2 in params["res"]:
        h = jnp.tanh(x)
        h = conv(h, w1, None, 1, 1)
        h = jnp.tanh(h)
        h = conv(h, w2, None, 1, 0)
        x = x + h
    return jnp.tanh(x)


# ----------------------------------- main ----------------------------------- #

if __name__ == "__main__":
    key = jax.random.PRNGKey(0)
    kx, kp = jax.random.split(key)

    B, Cin, L = 2, 4, 32
    num_hiddens, num_res_layers, num_res_hiddens = 32, 2, 8

    x = jax.random.normal(kx, (B, Cin, L), jnp.float32)
    params = init_encoder_params(kp, Cin, num_hiddens, num_res_layers,
                                 num_res_hiddens)
    prep = prepare_params(params)                            # one-time weight re-layout

    fwd = jax.jit(encoder_forward_pallas)
    out = jax.block_until_ready(fwd(prep, x))

    ref = encoder_forward_ref(params, x)
    assert out.shape == ref.shape == (B, num_hiddens, L // 8), (out.shape, ref.shape)
    max_err = float(jnp.max(jnp.abs(out - ref)))
    assert max_err < 1e-4, f"max abs err {max_err}"

    print("KERNEL_OK")
</pallas_src>

<mosaic_0001>
module attributes {stable_mosaic.version = 11 : i64} {
  func.func @_encoder_kernel(%arg0: i32, %arg1: memref<1x98x4xf32, #tpu.memory_space<vmem>>, %arg2: memref<16x16xf32, #tpu.memory_space<vmem>>, %arg3: memref<1x16xf32, #tpu.memory_space<vmem>>, %arg4: memref<64x32xf32, #tpu.memory_space<vmem>>, %arg5: memref<1x32xf32, #tpu.memory_space<vmem>>, %arg6: memref<96x32xf32, #tpu.memory_space<vmem>>, %arg7: memref<1x32xf32, #tpu.memory_space<vmem>>, %arg8: memref<2x96x8xf32, #tpu.memory_space<vmem>>, %arg9: memref<2x8x32xf32, #tpu.memory_space<vmem>>, %arg10: memref<1x12x32xf32, #tpu.memory_space<vmem>>, %arg11: memref<50x16xf32, #tpu.memory_space<vmem>>, %arg12: memref<26x32xf32, #tpu.memory_space<vmem>>, %arg13: memref<14x32xf32, #tpu.memory_space<vmem>>) attributes {dimension_semantics = [#tpu.dimension_semantics<parallel>], iteration_bounds = array<i64: 1>, scalar_prefetch = 0 : i64, scratch_operands = 3 : i64, tpu.core_type = #tpu.core_type<tc>, window_params = [{transform_indices = @transform_0, window_bounds = array<i64: 1, 98, 4>}, {pipeline_mode = #tpu.pipeline_mode<synchronous>, transform_indices = @transform_1, window_bounds = array<i64: 16, 16>}, {pipeline_mode = #tpu.pipeline_mode<synchronous>, transform_indices = @transform_2, window_bounds = array<i64: 1, 16>}, {pipeline_mode = #tpu.pipeline_mode<synchronous>, transform_indices = @transform_3, window_bounds = array<i64: 64, 32>}, {pipeline_mode = #tpu.pipeline_mode<synchronous>, transform_indices = @transform_4, window_bounds = array<i64: 1, 32>}, {pipeline_mode = #tpu.pipeline_mode<synchronous>, transform_indices = @transform_5, window_bounds = array<i64: 96, 32>}, {pipeline_mode = #tpu.pipeline_mode<synchronous>, transform_indices = @transform_6, window_bounds = array<i64: 1, 32>}, {pipeline_mode = #tpu.pipeline_mode<synchronous>, transform_indices = @transform_7, window_bounds = array<i64: 2, 96, 8>}, {pipeline_mode = #tpu.pipeline_mode<synchronous>, transform_indices = @transform_8, window_bounds = array<i64: 2, 8, 32>}, {transform_indices = @transform_9, window_bounds = array<i64: 1, 12, 32>}]} {
    %cst = arith.constant 0.000000e+00 : f32
    %0 = vector.broadcast %cst : f32 to vector<2x16xf32>
    %c0 = arith.constant 0 : index
    %c0_0 = arith.constant 0 : index
    %1 = vector.load %arg11[%c0, %c0_0] : memref<50x16xf32, #tpu.memory_space<vmem>>, vector<2x16xf32>
    tpu.vector_store %arg11[%c0, %c0_0], %0 {strides = array<i32>} : memref<50x16xf32, #tpu.memory_space<vmem>>, vector<2x16xf32>,
    %cst_1 = arith.constant 0.000000e+00 : f32
    %2 = vector.broadcast %cst_1 : f32 to vector<2x32xf32>
    %c0_2 = arith.constant 0 : index
    %c0_3 = arith.constant 0 : index
    %3 = vector.load %arg12[%c0_2, %c0_3] : memref<26x32xf32, #tpu.memory_space<vmem>>, vector<2x32xf32>
    tpu.vector_store %arg12[%c0_2, %c0_3], %2 {strides = array<i32>} : memref<26x32xf32, #tpu.memory_space<vmem>>, vector<2x32xf32>,
    %cst_4 = arith.constant 0.000000e+00 : f32
    %4 = vector.broadcast %cst_4 : f32 to vector<1x32xf32>
    %c0_5 = arith.constant 0 : index
    %c0_6 = arith.constant 0 : index
    %5 = vector.load %arg13[%c0_5, %c0_6] : memref<14x32xf32, #tpu.memory_space<vmem>>, vector<1x32xf32>
    tpu.vector_store %arg13[%c0_5, %c0_6], %4 {strides = array<i32>} : memref<14x32xf32, #tpu.memory_space<vmem>>, vector<1x32xf32>,
    %cst_7 = arith.constant 0.000000e+00 : f32
    %6 = vector.broadcast %cst_7 : f32 to vector<1x32xf32>
    %c13 = arith.constant 13 : index
    %c0_8 = arith.constant 0 : index
    %7 = vector.load %arg13[%c13, %c0_8] : memref<14x32xf32, #tpu.memory_space<vmem>>, vector<1x32xf32>
    tpu.vector_store %arg13[%c13, %c0_8], %6 {strides = array<i32>} : memref<14x32xf32, #tpu.memory_space<vmem>>, vector<1x32xf32>,
    %c0_9 = arith.constant 0 : index
    %c0_10 = arith.constant 0 : index
    %c0_11 = arith.constant 0 : index
    %8 = tpu.strided_load %arg1[%c0_9, %c0_10, %c0_11] {strides = array<i32: 1, 2, 1>} : memref<1x98x4xf32, #tpu.memory_space<vmem>>, vector<1x48x4xf32>
    %9 = vector.shape_cast %8 : vector<1x48x4xf32> to vector<48x4xf32>
    %c0_12 = arith.constant 0 : index
    %c1 = arith.constant 1 : index
    %c0_13 = arith.constant 0 : index
    %10 = tpu.strided_load %arg1[%c0_12, %c1, %c0_13] {strides = array<i32: 1, 2, 1>} : memref<1x98x4xf32, #tpu.memory_space<vmem>>, vector<1x48x4xf32>
    %11 = vector.shape_cast %10 : vector<1x48x4xf32> to vector<48x4xf32>
    %c0_14 = arith.constant 0 : index
    %c2 = arith.constant 2 : index
    %c0_15 = arith.constant 0 : index
    %12 = tpu.strided_load %arg1[%c0_14, %c2, %c0_15] {strides = array<i32: 1, 2, 1>} : memref<1x98x4xf32, #tpu.memory_space<vmem>>, vector<1x48x4xf32>
    %13 = vector.shape_cast %12 : vector<1x48x4xf32> to vector<48x4xf32>
    %c0_16 = arith.constant 0 : index
    %c3 = arith.constant 3 : index
    %c0_17 = arith.constant 0 : index
    %14 = tpu.strided_load %arg1[%c0_16, %c3, %c0_17] {strides = array<i32: 1, 2, 1>} : memref<1x98x4xf32, #tpu.memory_space<vmem>>, vector<1x48x4xf32>
    %15 = vector.shape_cast %14 : vector<1x48x4xf32> to vector<48x4xf32>
    %16 = tpu.concatenate %9, %11, %13, %15 in 1 : vector<48x4xf32>, vector<48x4xf32>, vector<48x4xf32>, vector<48x4xf32> -> vector<48x16xf32>
    %c0_18 = arith.constant 0 : index
    %c0_19 = arith.constant 0 : index
    %17 = vector.load %arg2[%c0_18, %c0_19] : memref<16x16xf32, #tpu.memory_space<vmem>>, vector<16x16xf32>
    %cst_20 = arith.constant dense<0.000000e+00> : vector<48x16xf32>
    %18 = tpu.matmul %16, %17, %cst_20 {dimension_numbers = #tpu.dot_dimension_numbers<[1], [0], [0], [1], [0, 0, 1, 1], [], []>} : vector<48x16xf32>, vector<16x16xf32>, vector<48x16xf32> -> vector<48x16xf32>
    %c0_21 = arith.constant 0 : index
    %c0_22 = arith.constant 0 : index
    %19 = vector.load %arg3[%c0_21, %c0_22] : memref<1x16xf32, #tpu.memory_space<vmem>>, vector<1x16xf32>
    %20 = vector.broadcast %19 : vector<1x16xf32> to vector<48x16xf32>
    %21 = arith.addf %18, %20 : vector<48x16xf32>
    %22 = tpu.iota {dimensions = array<i32: 0>} : vector<48x1xi32>
    %c24_i32 = arith.constant 24 : i32
    %23 = vector.broadcast %c24_i32 : i32 to vector<48x1xi32>
    %24 = arith.remsi %22, %23 : vector<48x1xi32>
    %c1_i32 = arith.constant 1 : i32
    %25 = vector.broadcast %c1_i32 : i32 to vector<48x1xi32>
    %26 = arith.cmpi sge, %24, %25 : vector<48x1xi32>
    %c16_i32 = arith.constant 16 : i32
    %27 = vector.broadcast %c16_i32 : i32 to vector<48x1xi32>
    %28 = arith.cmpi sle, %24, %27 : vector<48x1xi32>
    %29 = arith.andi %26, %28 : vector<48x1xi1>
    %cst_23 = arith.constant 0.000000e+00 : f32
    %30 = vector.shape_cast %29 : vector<48x1xi1> to vector<48x1xi1>
    %31 = vector.broadcast %30 : vector<48x1xi1> to vector<48x16xi1>
    %32 = vector.broadcast %cst_23 : f32 to vector<48x16xf32>
    %33 = arith.select %31, %21, %32 : vector<48x16xi1>, vector<48x16xf32>
    %34 = math.tanh %33 : vector<48x16xf32>
    %c2_24 = arith.constant 2 : index
    %c0_25 = arith.constant 0 : index
    %35 = vector.load %arg11[%c2_24, %c0_25] : memref<50x16xf32, #tpu.memory_space<vmem>>, vector<48x16xf32>
    tpu.vector_store %arg11[%c2_24, %c0_25], %34 {strides = array<i32>} : memref<50x16xf32, #tpu.memory_space<vmem>>, vector<48x16xf32>,
    %c0_26 = arith.constant 0 : index
    %c0_27 = arith.constant 0 : index
    %36 = tpu.strided_load %arg11[%c0_26, %c0_27] {strides = array<i32: 2, 1>} : memref<50x16xf32, #tpu.memory_space<vmem>>, vector<24x16xf32>
    %c1_28 = arith.constant 1 : index
    %c0_29 = arith.constant 0 : index
    %37 = tpu.strided_load %arg11[%c1_28, %c0_29] {strides = array<i32: 2, 1>} : memref<50x16xf32, #tpu.memory_space<vmem>>, vector<24x16xf32>
    %c2_30 = arith.constant 2 : index
    %c0_31 = arith.constant 0 : index
    %38 = tpu.strided_load %arg11[%c2_30, %c0_31] {strides = array<i32: 2, 1>} : memref<50x16xf32, #tpu.memory_space<vmem>>, vector<24x16xf32>
    %c3_32 = arith.constant 3 : index
    %c0_33 = arith.constant 0 : index
    %39 = tpu.strided_load %arg11[%c3_32, %c0_33] {strides = array<i32: 2, 1>} : memref<50x16xf32, #tpu.memory_space<vmem>>, vector<24x16xf32>
    %40 = tpu.concatenate %36, %37, %38, %39 in 1 : vector<24x16xf32>, vector<24x16xf32>, vector<24x16xf32>, vector<24x16xf32> -> vector<24x64xf32>
    %c0_34 = arith.constant 0 : index
    %c0_35 = arith.constant 0 : index
    %41 = vector.load %arg4[%c0_34, %c0_35] : memref<64x32xf32, #tpu.memory_space<vmem>>, vector<64x32xf32>
    %cst_36 = arith.constant dense<0.000000e+00> : vector<24x32xf32>
    %42 = tpu.matmul %40, %41, %cst_36 {dimension_numbers = #tpu.dot_dimension_numbers<[1], [0], [0], [1], [0, 0, 1, 1], [], []>} : vector<24x64xf32>, vector<64x32xf32>, vector<24x32xf32> -> vector<24x32xf32>
    %c0_37 = arith.constant 0 : index
    %c0_38 = arith.constant 0 : index
    %43 = vector.load %arg5[%c0_37, %c0_38] : memref<1x32xf32, #tpu.memory_space<vmem>>, vector<1x32xf32>
    %44 = vector.broadcast %43 : vector<1x32xf32> to vector<24x32xf32>
    %45 = arith.addf %42, %44 : vector<24x32xf32>
    %46 = tpu.iota {dimensions = array<i32: 0>} : vector<24x1xi32>
    %c12_i32 = arith.constant 12 : i32
    %47 = vector.broadcast %c12_i32 : i32 to vector<24x1xi32>
    %48 = arith.remsi %46, %47 : vector<24x1xi32>
    %c1_i32_39 = arith.constant 1 : i32
    %49 = vector.broadcast %c1_i32_39 : i32 to vector<24x1xi32>
    %50 = arith.cmpi sge, %48, %49 : vector<24x1xi32>
    %c8_i32 = arith.constant 8 : i32
    %51 = vector.broadcast %c8_i32 : i32 to vector<24x1xi32>
    %52 = arith.cmpi sle, %48, %51 : vector<24x1xi32>
    %53 = arith.andi %50, %52 : vector<24x1xi1>
    %cst_40 = arith.constant 0.000000e+00 : f32
    %54 = vector.shape_cast %53 : vector<24x1xi1> to vector<24x1xi1>
    %55 = vector.broadcast %54 : vector<24x1xi1> to vector<24x32xi1>
    %56 = vector.broadcast %cst_40 : f32 to vector<24x32xf32>
    %57 = arith.select %55, %45, %56 : vector<24x32xi1>, vector<24x32xf32>
    %58 = math.tanh %57 : vector<24x32xf32>
    %c2_41 = arith.constant 2 : index
    %c0_42 = arith.constant 0 : index
    %59 = vector.load %arg12[%c2_41, %c0_42] : memref<26x32xf32, #tpu.memory_space<vmem>>, vector<24x32xf32>
    tpu.vector_store %arg12[%c2_41, %c0_42], %58 {strides = array<i32>} : memref<26x32xf32, #tpu.memory_space<vmem>>, vector<24x32xf32>,
    %c0_43 = arith.constant 0 : index
    %c0_44 = arith.constant 0 : index
    %60 = tpu.strided_load %arg12[%c0_43, %c0_44] {strides = array<i32: 2, 1>} : memref<26x32xf32, #tpu.memory_space<vmem>>, vector<12x32xf32>
    %c1_45 = arith.constant 1 : index
    %c0_46 = arith.constant 0 : index
    %61 = tpu.strided_load %arg12[%c1_45, %c0_46] {strides = array<i32: 2, 1>} : memref<26x32xf32, #tpu.memory_space<vmem>>, vector<12x32xf32>
    %c2_47 = arith.constant 2 : index
    %c0_48 = arith.constant 0 : index
    %62 = tpu.strided_load %arg12[%c2_47, %c0_48] {strides = array<i32: 2, 1>} : memref<26x32xf32, #tpu.memory_space<vmem>>, vector<12x32xf32>
    %63 = tpu.concatenate %60, %61, %62 in 1 : vector<12x32xf32>, vector<12x32xf32>, vector<12x32xf32> -> vector<12x96xf32>
    %c0_49 = arith.constant 0 : index
    %c0_50 = arith.constant 0 : index
    %64 = vector.load %arg6[%c0_49, %c0_50] : memref<96x32xf32, #tpu.memory_space<vmem>>, vector<96x32xf32>
    %cst_51 = arith.constant dense<0.000000e+00> : vector<12x32xf32>
    %65 = tpu.matmul %63, %64, %cst_51 {dimension_numbers = #tpu.dot_dimension_numbers<[1], [0], [0], [1], [0, 0, 1, 1], [], []>} : vector<12x96xf32>, vector<96x32xf32>, vector<12x32xf32> -> vector<12x32xf32>
    %c0_52 = arith.constant 0 : index
    %c0_53 = arith.constant 0 : index
    %66 = vector.load %arg7[%c0_52, %c0_53] : memref<1x32xf32, #tpu.memory_space<vmem>>, vector<1x32xf32>
    %67 = vector.broadcast %66 : vector<1x32xf32> to vector<12x32xf32>
    %68 = arith.addf %65, %67 : vector<12x32xf32>
    %69 = tpu.iota {dimensions = array<i32: 0>} : vector<12x1xi32>
    %c6_i32 = arith.constant 6 : i32
    %70 = vector.broadcast %c6_i32 : i32 to vector<12x1xi32>
    %71 = arith.remsi %69, %70 : vector<12x1xi32>
    %c1_i32_54 = arith.constant 1 : i32
    %72 = vector.broadcast %c1_i32_54 : i32 to vector<12x1xi32>
    %73 = arith.cmpi sge, %71, %72 : vector<12x1xi32>
    %c4_i32 = arith.constant 4 : i32
    %74 = vector.broadcast %c4_i32 : i32 to vector<12x1xi32>
    %75 = arith.cmpi sle, %71, %74 : vector<12x1xi32>
    %76 = arith.andi %73, %75 : vector<12x1xi1>
    %cst_55 = arith.constant 0.000000e+00 : f32
    %77 = vector.shape_cast %76 : vector<12x1xi1> to vector<12x1xi1>
    %78 = vector.broadcast %77 : vector<12x1xi1> to vector<12x32xi1>
    %79 = vector.broadcast %cst_55 : f32 to vector<12x32xf32>
    %80 = arith.select %78, %68, %79 : vector<12x32xi1>, vector<12x32xf32>
    %81 = tpu.iota {dimensions = array<i32: 0>} : vector<12x1xi32>
    %c6_i32_56 = arith.constant 6 : i32
    %82 = vector.broadcast %c6_i32_56 : i32 to vector<12x1xi32>
    %83 = arith.remsi %81, %82 : vector<12x1xi32>
    %c1_i32_57 = arith.constant 1 : i32
    %84 = vector.broadcast %c1_i32_57 : i32 to vector<12x1xi32>
    %85 = arith.cmpi sge, %83, %84 : vector<12x1xi32>
    %c4_i32_58 = arith.constant 4 : i32
    %86 = vector.broadcast %c4_i32_58 : i32 to vector<12x1xi32>
    %87 = arith.cmpi sle, %83, %86 : vector<12x1xi32>
    %88 = arith.andi %85, %87 : vector<12x1xi1>
    %89 = math.tanh %80 : vector<12x32xf32>
    %c1_59 = arith.constant 1 : index
    %c0_60 = arith.constant 0 : index
    %90 = vector.load %arg13[%c1_59, %c0_60] : memref<14x32xf32, #tpu.memory_space<vmem>>, vector<12x32xf32>
    tpu.vector_store %arg13[%c1_59, %c0_60], %89 {strides = array<i32>} : memref<14x32xf32, #tpu.memory_space<vmem>>, vector<12x32xf32>,
    %c0_61 = arith.constant 0 : index
    %c0_62 = arith.constant 0 : index
    %91 = vector.load %arg13[%c0_61, %c0_62] : memref<14x32xf32, #tpu.memory_space<vmem>>, vector<12x32xf32>
    %c2_63 = arith.constant 2 : index
    %c0_64 = arith.constant 0 : index
    %92 = vector.load %arg13[%c2_63, %c0_64] : memref<14x32xf32, #tpu.memory_space<vmem>>, vector<12x32xf32>
    %93 = tpu.concatenate %91, %89, %92 in 1 : vector<12x32xf32>, vector<12x32xf32>, vector<12x32xf32> -> vector<12x96xf32>
    %c0_65 = arith.constant 0 : index
    %c0_66 = arith.constant 0 : index
    %c0_67 = arith.constant 0 : index
    %94 = vector.load %arg8[%c0_65, %c0_66, %c0_67] : memref<2x96x8xf32, #tpu.memory_space<vmem>>, vector<1x96x8xf32>
    %95 = vector.shape_cast %94 : vector<1x96x8xf32> to vector<96x8xf32>
    %cst_68 = arith.constant dense<0.000000e+00> : vector<12x8xf32>
    %96 = tpu.matmul %93, %95, %cst_68 {dimension_numbers = #tpu.dot_dimension_numbers<[1], [0], [0], [1], [0, 0, 1, 1], [], []>} : vector<12x96xf32>, vector<96x8xf32>, vector<12x8xf32> -> vector<12x8xf32>
    %97 = math.tanh %96 : vector<12x8xf32>
    %c0_69 = arith.constant 0 : index
    %c0_70 = arith.constant 0 : index
    %c0_71 = arith.constant 0 : index
    %98 = vector.load %arg9[%c0_69, %c0_70, %c0_71] : memref<2x8x32xf32, #tpu.memory_space<vmem>>, vector<1x8x32xf32>
    %99 = vector.shape_cast %98 : vector<1x8x32xf32> to vector<8x32xf32>
    %cst_72 = arith.constant dense<0.000000e+00> : vector<12x32xf32>
    %100 = tpu.matmul %97, %99, %cst_72 {dimension_numbers = #tpu.dot_dimension_numbers<[1], [0], [0], [1], [0, 0, 1, 1], [], []>} : vector<12x8xf32>, vector<8x32xf32>, vector<12x32xf32> -> vector<12x32xf32>
    %cst_73 = arith.constant 0.000000e+00 : f32
    %101 = vector.shape_cast %88 : vector<12x1xi1> to vector<12x1xi1>
    %102 = vector.broadcast %101 : vector<12x1xi1> to vector<12x32xi1>
    %103 = vector.broadcast %cst_73 : f32 to vector<12x32xf32>
    %104 = arith.select %102, %100, %103 : vector<12x32xi1>, vector<12x32xf32>
    %105 = arith.addf %80, %104 : vector<12x32xf32>
    %106 = math.tanh %105 : vector<12x32xf32>
    %c1_74 = arith.constant 1 : index
    %c0_75 = arith.constant 0 : index
    %107 = vector.load %arg13[%c1_74, %c0_75] : memref<14x32xf32, #tpu.memory_space<vmem>>, vector<12x32xf32>
    tpu.vector_store %arg13[%c1_74, %c0_75], %106 {strides = array<i32>} : memref<14x32xf32, #tpu.memory_space<vmem>>, vector<12x32xf32>,
    %c0_76 = arith.constant 0 : index
    %c0_77 = arith.constant 0 : index
    %108 = vector.load %arg13[%c0_76, %c0_77] : memref<14x32xf32, #tpu.memory_space<vmem>>, vector<12x32xf32>
    %c2_78 = arith.constant 2 : index
    %c0_79 = arith.constant 0 : index
    %109 = vector.load %arg13[%c2_78, %c0_79] : memref<14x32xf32, #tpu.memory_space<vmem>>, vector<12x32xf32>
    %110 = tpu.concatenate %108, %106, %109 in 1 : vector<12x32xf32>, vector<12x32xf32>, vector<12x32xf32> -> vector<12x96xf32>
    %c1_80 = arith.constant 1 : index
    %c0_81 = arith.constant 0 : index
    %c0_82 = arith.constant 0 : index
    %111 = vector.load %arg8[%c1_80, %c0_81, %c0_82] : memref<2x96x8xf32, #tpu.memory_space<vmem>>, vector<1x96x8xf32>
    %112 = vector.shape_cast %111 : vector<1x96x8xf32> to vector<96x8xf32>
    %cst_83 = arith.constant dense<0.000000e+00> : vector<12x8xf32>
    %113 = tpu.matmul %110, %112, %cst_83 {dimension_numbers = #tpu.dot_dimension_numbers<[1], [0], [0], [1], [0, 0, 1, 1], [], []>} : vector<12x96xf32>, vector<96x8xf32>, vector<12x8xf32> -> vector<12x8xf32>
    %114 = math.tanh %113 : vector<12x8xf32>
    %c1_84 = arith.constant 1 : index
    %c0_85 = arith.constant 0 : index
    %c0_86 = arith.constant 0 : index
    %115 = vector.load %arg9[%c1_84, %c0_85, %c0_86] : memref<2x8x32xf32, #tpu.memory_space<vmem>>, vector<1x8x32xf32>
    %116 = vector.shape_cast %115 : vector<1x8x32xf32> to vector<8x32xf32>
    %cst_87 = arith.constant dense<0.000000e+00> : vector<12x32xf32>
    %117 = tpu.matmul %114, %116, %cst_87 {dimension_numbers = #tpu.dot_dimension_numbers<[1], [0], [0], [1], [0, 0, 1, 1], [], []>} : vector<12x8xf32>, vector<8x32xf32>, vector<12x32xf32> -> vector<12x32xf32>
    %cst_88 = arith.constant 0.000000e+00 : f32
    %118 = vector.shape_cast %88 : vector<12x1xi1> to vector<12x1xi1>
    %119 = vector.broadcast %118 : vector<12x1xi1> to vector<12x32xi1>
    %120 = vector.broadcast %cst_88 : f32 to vector<12x32xf32>
    %121 = arith.select %119, %117, %120 : vector<12x32xi1>, vector<12x32xf32>
    %122 = arith.addf %105, %121 : vector<12x32xf32>
    %123 = math.tanh %122 : vector<12x32xf32>
    %c0_89 = arith.constant 0 : index
    %c0_90 = arith.constant 0 : index
    %c0_91 = arith.constant 0 : index
    %124 = vector.load %arg10[%c0_89, %c0_90, %c0_91] : memref<1x12x32xf32, #tpu.memory_space<vmem>>, vector<1x12x32xf32>
    %125 = vector.shape_cast %124 : vector<1x12x32xf32> to vector<12x32xf32>
    %126 = vector.shape_cast %123 : vector<12x32xf32> to vector<1x12x32xf32>
    tpu.vector_store %arg10[%c0_89, %c0_90, %c0_91], %126 {strides = array<i32>} : memref<1x12x32xf32, #tpu.memory_space<vmem>>, vector<1x12x32xf32>,
    return
  }
  func.func @transform_0(%arg0: i32) -> (i32, i32, i32) {
    %c0_i32 = arith.constant 0 : i32
    %c0_i32_0 = arith.constant 0 : i32
    %c0_i32_1 = arith.constant 0 : i32
    return %arg0, %c0_i32, %c0_i32_0 : i32, i32, i32
  }
  func.func @transform_1(%arg0: i32) -> (i32, i32) {
    %c0_i32 = arith.constant 0 : i32
    %c0_i32_0 = arith.constant 0 : i32
    %c0_i32_1 = arith.constant 0 : i32
    return %c0_i32, %c0_i32_0 : i32, i32
  }
  func.func @transform_2(%arg0: i32) -> (i32, i32) {
    %c0_i32 = arith.constant 0 : i32
    %c0_i32_0 = arith.constant 0 : i32
    %c0_i32_1 = arith.constant 0 : i32
    return %c0_i32, %c0_i32_0 : i32, i32
  }
  func.func @transform_3(%arg0: i32) -> (i32, i32) {
    %c0_i32 = arith.constant 0 : i32
    %c0_i32_0 = arith.constant 0 : i32
    %c0_i32_1 = arith.constant 0 : i32
    return %c0_i32, %c0_i32_0 : i32, i32
  }
  func.func @transform_4(%arg0: i32) -> (i32, i32) {
    %c0_i32 = arith.constant 0 : i32
    %c0_i32_0 = arith.constant 0 : i32
    %c0_i32_1 = arith.constant 0 : i32
    return %c0_i32, %c0_i32_0 : i32, i32
  }
  func.func @transform_5(%arg0: i32) -> (i32, i32) {
    %c0_i32 = arith.constant 0 : i32
    %c0_i32_0 = arith.constant 0 : i32
    %c0_i32_1 = arith.constant 0 : i32
    return %c0_i32, %c0_i32_0 : i32, i32
  }
  func.func @transform_6(%arg0: i32) -> (i32, i32) {
    %c0_i32 = arith.constant 0 : i32
    %c0_i32_0 = arith.constant 0 : i32
    %c0_i32_1 = arith.constant 0 : i32
    return %c0_i32, %c0_i32_0 : i32, i32
  }
  func.func @transform_7(%arg0: i32) -> (i32, i32, i32) {
    %c0_i32 = arith.constant 0 : i32
    %c0_i32_0 = arith.constant 0 : i32
    %c0_i32_1 = arith.constant 0 : i32
    %c0_i32_2 = arith.constant 0 : i32
    return %c0_i32, %c0_i32_0, %c0_i32_1 : i32, i32, i32
  }
  func.func @transform_8(%arg0: i32) -> (i32, i32, i32) {
    %c0_i32 = arith.constant 0 : i32
    %c0_i32_0 = arith.constant 0 : i32
    %c0_i32_1 = arith.constant 0 : i32
    %c0_i32_2 = arith.constant 0 : i32
    return %c0_i32, %c0_i32_0, %c0_i32_1 : i32, i32, i32
  }
  func.func @transform_9(%arg0: i32) -> (i32, i32, i32) {
    %c0_i32 = arith.constant 0 : i32
    %c0_i32_0 = arith.constant 0 : i32
    %c0_i32_1 = arith.constant 0 : i32
    return %arg0, %c0_i32, %c0_i32_0 : i32, i32, i32
  }
}

</mosaic_0001>

<llo_original>
// kernel: encoder_forward_pallas.1
$region0: #{encoder_forward_pallas.1}
  #allocation0 [shape = 'u32[]', space=smem, size = 0x4, offset = 0x4, fixed_abs, tag = 'smem constant byte address 0x4 - core index']
  #allocation1 [shape = 'u32[72,128]{1,0:T(1,128)}', space=vmem, size = 0x9000, scoped, tag = 'internal scratch']
  #allocation2 [shape = 'f32[50,16]{1,0:T(8,128)}', space=vmem, size = 0x7000, scoped, tag = 'scratch operand']
  #allocation3 [shape = 'f32[26,32]{1,0:T(8,128)}', space=vmem, size = 0x4000, scoped, tag = 'scratch operand']
  #allocation4 [shape = 'f32[14,32]{1,0:T(8,128)}', space=vmem, size = 0x2000, scoped, tag = 'scratch operand']
  %s0 = inlined_call_operand.vmem [shape: f32[1,98,4], index: 0, kind: input, shape index: {}]
  %s1 = inlined_call_operand.vmem [shape: f32[16,16], index: 1, kind: input, shape index: {}]
  %s2 = inlined_call_operand.vmem [shape: f32[1,16], index: 2, kind: input, shape index: {}]
  %s3 = inlined_call_operand.vmem [shape: f32[64,32], index: 3, kind: input, shape index: {}]
  %s4 = inlined_call_operand.vmem [shape: f32[1,32], index: 4, kind: input, shape index: {}]
  %s5 = inlined_call_operand.vmem [shape: f32[96,32], index: 5, kind: input, shape index: {}]
  %s6 = inlined_call_operand.vmem [shape: f32[1,32], index: 6, kind: input, shape index: {}]
  %s7 = inlined_call_operand.vmem [shape: f32[2,96,8], index: 7, kind: input, shape index: {}]
  %s8 = inlined_call_operand.vmem [shape: f32[2,8,32], index: 8, kind: input, shape index: {}]
  %s9 = inlined_call_operand.vmem [shape: f32[1,12,32], index: 9, kind: output, shape index: {}]
  %s10 = sld [smem:[#allocation0]]
  $region46: #{encoder_forward_pallas.1} parent=0
    _
  %s12 = ssub.s32 1, %s10
  %s13 = scalar_select 0, %s12, %s10
  // Predicated region
  $region2: #{encoder_forward_pallas.1} parent=0 // pred_check
    _
  $region3: #{encoder_forward_pallas.1} parent=0 // pred_check_branch
    %15 = sbr.rel (0) target = $region5
  $region4: #{encoder_forward_pallas.1} parent=0 // pred_region
    _
  $region5: #{encoder_forward_pallas.1} parent=0 // pred_fallthru
    _
  // Predicated region
  $region6: #{encoder_forward_pallas.1} parent=0 // pred_check
    _
  $region7: #{encoder_forward_pallas.1} parent=0 // pred_check_branch
    %17 = sbr.rel (0) target = $region9
  $region8: #{encoder_forward_pallas.1} parent=0 // pred_region
    _
  $region9: #{encoder_forward_pallas.1} parent=0 // pred_fallthru
    _
  // Predicated region
  $region10: #{encoder_forward_pallas.1} parent=0 // pred_check
    _
  $region11: #{encoder_forward_pallas.1} parent=0 // pred_check_branch
    %19 = sbr.rel (0) target = $region13
  $region12: #{encoder_forward_pallas.1} parent=0 // pred_region
    _
  $region13: #{encoder_forward_pallas.1} parent=0 // pred_fallthru
    _
  // Predicated region
  $region14: #{encoder_forward_pallas.1} parent=0 // pred_check
    _
  $region15: #{encoder_forward_pallas.1} parent=0 // pred_check_branch
    %21 = sbr.rel (0) target = $region17
  $region16: #{encoder_forward_pallas.1} parent=0 // pred_region
    _
  $region17: #{encoder_forward_pallas.1} parent=0 // pred_fallthru
    _
  // Predicated region
  $region18: #{encoder_forward_pallas.1} parent=0 // pred_check
    _
  $region19: #{encoder_forward_pallas.1} parent=0 // pred_check_branch
    %23 = sbr.rel (0) target = $region21
  $region20: #{encoder_forward_pallas.1} parent=0 // pred_region
    _
  $region21: #{encoder_forward_pallas.1} parent=0 // pred_fallthru
    _
  // Predicated region
  $region22: #{encoder_forward_pallas.1} parent=0 // pred_check
    _
  $region23: #{encoder_forward_pallas.1} parent=0 // pred_check_branch
    %25 = sbr.rel (0) target = $region25
  $region24: #{encoder_forward_pallas.1} parent=0 // pred_region
    _
  $region25: #{encoder_forward_pallas.1} parent=0 // pred_fallthru
    _
  // Predicated region
  $region26: #{encoder_forward_pallas.1} parent=0 // pred_check
    _
  $region27: #{encoder_forward_pallas.1} parent=0 // pred_check_branch
    %27 = sbr.rel (0) target = $region29
  $region28: #{encoder_forward_pallas.1} parent=0 // pred_region
    _
  $region29: #{encoder_forward_pallas.1} parent=0 // pred_fallthru
    _
  // Predicated region
  $region30: #{encoder_forward_pallas.1} parent=0 // pred_check
    _
  $region31: #{encoder_forward_pallas.1} parent=0 // pred_check_branch
    %29 = sbr.rel (0) target = $region33
  $region32: #{encoder_forward_pallas.1} parent=0 // pred_region
    _
  $region33: #{encoder_forward_pallas.1} parent=0 // pred_fallthru
    _
  // Predicated region
  $region34: #{encoder_forward_pallas.1} parent=0 // pred_check
    _
  $region35: #{encoder_forward_pallas.1} parent=0 // pred_check_branch
    %31 = sbr.rel (0) target = $region37
  $region36: #{encoder_forward_pallas.1} parent=0 // pred_region
    _
  $region37: #{encoder_forward_pallas.1} parent=0 // pred_fallthru
    _
  %vm32 = vcmask 123904
  %33 = vst.msk [vmem:[#allocation2] sm:$0x3] %vm32, 0.0
  %vm34 = vcmask 254976
  %35 = vst.msk [vmem:[#allocation3] sm:$0x3] %vm34, 0.0
  %vm36 = vcmask 253952
  %37 = vst.msk [vmem:[#allocation4] sm:$0x1] %vm36, 0.0
  %38 = vst.msk [vmem:[#allocation4 + $0xd] sm:$0x1] %vm36, 0.0
  %v39 = vld [vmem:[%s0] ss:$2 sm:$0xff]
  %s40 = scalar_lea.vmem %s0, 16
  %v41 = vld [vmem:[%s40] ss:$2 sm:$0xff]
  %s42 = scalar_lea.vmem %s0, 32
  %v43 = vld [vmem:[%s42] ss:$2 sm:$0xff]
  %s44 = scalar_lea.vmem %s0, 48
  %v45 = vld [vmem:[%s44] ss:$2 sm:$0xff]
  %s46 = scalar_lea.vmem %s0, 64
  %v47 = vld [vmem:[%s46] ss:$2 sm:$0xff]
  %s48 = scalar_lea.vmem %s0, 80
  %v49 = vld [vmem:[%s48] ss:$2 sm:$0xff]
  %s50 = scalar_lea.vmem %s0, 1
  %v51 = vld [vmem:[%s50] ss:$2 sm:$0xff]
  %s52 = scalar_lea.vmem %s0, 17
  %v53 = vld [vmem:[%s52] ss:$2 sm:$0xff]
  %s54 = scalar_lea.vmem %s0, 33
  %v55 = vld [vmem:[%s54] ss:$2 sm:$0xff]
  %s56 = scalar_lea.vmem %s0, 49
  %v57 = vld [vmem:[%s56] ss:$2 sm:$0xff]
  %s58 = scalar_lea.vmem %s0, 65
  %v59 = vld [vmem:[%s58] ss:$2 sm:$0xff]
  %s60 = scalar_lea.vmem %s0, 81
  %v61 = vld [vmem:[%s60] ss:$2 sm:$0xff]
  %s62 = scalar_lea.vmem %s0, 2
  %v63 = vld [vmem:[%s62] ss:$2 sm:$0xff]
  %s64 = scalar_lea.vmem %s0, 18
  %v65 = vld [vmem:[%s64] ss:$2 sm:$0xff]
  %s66 = scalar_lea.vmem %s0, 34
  %v67 = vld [vmem:[%s66] ss:$2 sm:$0xff]
  %s68 = scalar_lea.vmem %s0, 50
  %v69 = vld [vmem:[%s68] ss:$2 sm:$0xff]
  %s70 = scalar_lea.vmem %s0, 66
  %v71 = vld [vmem:[%s70] ss:$2 sm:$0xff]
  %s72 = scalar_lea.vmem %s0, 82
  %v73 = vld [vmem:[%s72] ss:$2 sm:$0xff]
  %s74 = scalar_lea.vmem %s0, 3
  %v75 = vld [vmem:[%s74] ss:$2 sm:$0xff]
  %s76 = scalar_lea.vmem %s0, 19
  %v77 = vld [vmem:[%s76] ss:$2 sm:$0xff]
  %s78 = scalar_lea.vmem %s0, 35
  %v79 = vld [vmem:[%s78] ss:$2 sm:$0xff]
  %s80 = scalar_lea.vmem %s0, 51
  %v81 = vld [vmem:[%s80] ss:$2 sm:$0xff]
  %s82 = scalar_lea.vmem %s0, 67
  %v83 = vld [vmem:[%s82] ss:$2 sm:$0xff]
  %s84 = scalar_lea.vmem %s0, 83
  %v85 = vld [vmem:[%s84] ss:$2 sm:$0xff]
  %92 = vrot.lane.b32.xlu0 %v51, 4
  %v93 = vpop.permute.xlu0 %92
  %94 = vrot.lane.b32.xlu0 %v53, 4
  %v95 = vpop.permute.xlu0 %94
  %96 = vrot.lane.b32.xlu0 %v55, 4
  %v97 = vpop.permute.xlu0 %96
  %98 = vrot.lane.b32.xlu0 %v57, 4
  %v99 = vpop.permute.xlu0 %98
  %100 = vrot.lane.b32.xlu0 %v59, 4
  %v101 = vpop.permute.xlu0 %100
  %102 = vrot.lane.b32.xlu0 %v61, 4
  %v103 = vpop.permute.xlu0 %102
  %116 = vrot.lane.b32.xlu0 %v63, 8
  %v117 = vpop.permute.xlu0 %116
  %118 = vrot.lane.b32.xlu0 %v65, 8
  %v119 = vpop.permute.xlu0 %118
  %120 = vrot.lane.b32.xlu0 %v67, 8
  %v121 = vpop.permute.xlu0 %120
  %122 = vrot.lane.b32.xlu0 %v69, 8
  %v123 = vpop.permute.xlu0 %122
  %124 = vrot.lane.b32.xlu0 %v71, 8
  %v125 = vpop.permute.xlu0 %124
  %126 = vrot.lane.b32.xlu0 %v73, 8
  %v127 = vpop.permute.xlu0 %126
  %140 = vrot.lane.b32.xlu0 %v75, 12
  %v141 = vpop.permute.xlu0 %140
  %142 = vrot.lane.b32.xlu0 %v77, 12
  %v143 = vpop.permute.xlu0 %142
  %144 = vrot.lane.b32.xlu0 %v79, 12
  %v145 = vpop.permute.xlu0 %144
  %146 = vrot.lane.b32.xlu0 %v81, 12
  %v147 = vpop.permute.xlu0 %146
  %148 = vrot.lane.b32.xlu0 %v83, 12
  %v149 = vpop.permute.xlu0 %148
  %150 = vrot.lane.b32.xlu0 %v85, 12
  %v151 = vpop.permute.xlu0 %150
  %vm158 = vcmask 31744
  %v159 = vsel %vm158, %v39, %v93
  %v160 = vsel %vm158, %v41, %v95
  %v161 = vsel %vm158, %v43, %v97
  %v162 = vsel %vm158, %v45, %v99
  %v163 = vsel %vm158, %v47, %v101
  %v164 = vsel %vm158, %v49, %v103
  %vm165 = vcmask 64512
  %v166 = vsel %vm165, %v159, %v117
  %v167 = vsel %vm165, %v160, %v119
  %v168 = vsel %vm165, %v161, %v121
  %v169 = vsel %vm165, %v162, %v123
  %v170 = vsel %vm165, %v163, %v125
  %v171 = vsel %vm165, %v164, %v127
  %vm172 = vcmask 97280
  %v173 = vsel %vm172, %v166, %v141
  %v174 = vsel %vm172, %v167, %v143
  %v175 = vsel %vm172, %v168, %v145
  %v176 = vsel %vm172, %v169, %v147
  %v177 = vsel %vm172, %v170, %v149
  %v178 = vsel %vm172, %v171, %v151
  %v179 = vld [vmem:[%s1] sm:$0xff]
  %v180 = vld [vmem:[%s1 + $0x8] sm:$0xff]
  %v181 = vld [vmem:[%s2] sm:$0x1]
  %v183 = vperm.slane %v181, 0
  %vm185 = vcmask 130048
  %v187 = vsel %vm185, %v173, 0
  %v190 = vsel %vm185, %v174, 0
  %v193 = vsel %vm185, %v175, 0
  %v196 = vsel %vm185, %v176, 0
  %v199 = vsel %vm185, %v177, 0
  %v202 = vsel %vm185, %v178, 0
  %204 = vmatpush.msra.mxu0 0.0
  %205 = vmatpush.msra.mxu0 0.0
  %206 = vmatpush.msra.mxu0 0.0
  %207 = vmatpush.msra.mxu0 0.0
  %208 = vmatpush.msra.mxu0 0.0
  %209 = vmatpush.msra.mxu0 0.0
  %210 = vmatpush.msra.mxu0 0.0
  %211 = vmatpush.msra.mxu0 0.0
  %212 = vmatpush.msra.mxu0 0.0
  %213 = vmatpush.msra.mxu0 0.0
  %214 = vmatpush.msra.mxu0 0.0
  %215 = vmatpush.msra.mxu0 0.0
  %216 = vmatpush.msra.mxu0 0.0
  %217 = vmatpush.msra.mxu0 0.0
  %218 = vmatpush.msra.mxu0 %v180
  %219 = vmatpush.msra.mxu0 %v179
  %220 = vmatmul.f32.gmra.mxu0 %v187
  %v221 = vpop.f32.mrf.mxu0
  %v222 = vadd.f32 %v183, %v221
  %223 = vmatmul.f32.gmra.mxu0 %v190
  %v224 = vpop.f32.mrf.mxu0
  %v225 = vadd.f32 %v183, %v224
  %226 = vmatmul.f32.gmra.mxu0 %v193
  %v227 = vpop.f32.mrf.mxu0
  %v228 = vadd.f32 %v183, %v227
  %229 = vmatmul.f32.gmra.mxu0 %v196
  %v230 = vpop.f32.mrf.mxu0
  %v231 = vadd.f32 %v183, %v230
  %232 = vmatmul.f32.gmra.mxu0 %v199
  %v233 = vpop.f32.mrf.mxu0
  %v234 = vadd.f32 %v183, %v233
  %235 = vmatmul.f32.gmra.mxu0 %v202
  %v236 = vpop.f32.mrf.mxu0
  %v237 = vadd.f32 %v183, %v236
  %238 = vdwg.mxu0
  %v239 = vlaneseq
  %v240 = vshrl.u32 %v239, 7
  %v241 = vadd.s32 %v240, 8
  %v242 = vadd.s32 %v240, 16
  %v243 = vadd.s32 %v240, 24
  %v244 = vadd.s32 %v240, 32
  %v245 = vadd.s32 %v240, 40
  %vm246 = vcmp.lt.s32.totalorder %v240, 0
  %v247 = vsub.s32 0, %v240
  %v248 = vsel %vm246, %v247, %v240
  %v249 = vand.u32 %v248, 65535
  %v250 = vshrl.u32 %v248, 16
  %v252 = vmul.u32 %v249, 43691
  %v253 = vmul.u32 %v249, 43690
  %v254 = vmul.u32 %v250, 43691
  %v255 = vmul.u32 %v250, 43690
  %v256 = vshll.u32 %v253, 16
  %v257 = vshrl.u32 %v253, 16
  %v258 = vshll.u32 %v254, 16
  %v259 = vshrl.u32 %v254, 16
  %vm260 = vc.u32 %v252, %v256
  %v261 = vsel %vm260, 1, 0
  %v262 = vadd.s32 %v252, %v256
  %v263 = vadd.s32 %v255, %v261
  %vm264 = vc.u32 %v262, %v258
  %v265 = vsel %vm264, 1, 0
  %v266 = vadd.s32 %v262, %v258
  %v267 = vadd.s32 %v263, %v265
  %v268 = vadd.s32 %v267, %v257
  %v269 = vadd.s32 %v268, %v259
  %v270 = vshrl.u32 %v269, 4
  %v271 = vmul.u32 %v270, 24
  %v272 = vsub.s32 %v248, %v271
  %v273 = vsub.s32 0, %v272
  %v274 = vsel %vm246, %v273, %v272
  %vm275 = vcmp.lt.s32.totalorder %v241, 0
  %v276 = vsub.s32 0, %v241
  %v277 = vsel %vm275, %v276, %v241
  %v278 = vand.u32 %v277, 65535
  %v279 = vshrl.u32 %v277, 16
  %v281 = vmul.u32 %v278, 43691
  %v282 = vmul.u32 %v278, 43690
  %v283 = vmul.u32 %v279, 43691
  %v284 = vmul.u32 %v279, 43690
  %v285 = vshll.u32 %v282, 16
  %v286 = vshrl.u32 %v282, 16
  %v287 = vshll.u32 %v283, 16
  %v288 = vshrl.u32 %v283, 16
  %vm289 = vc.u32 %v281, %v285
  %v290 = vsel %vm289, 1, 0
  %v291 = vadd.s32 %v281, %v285
  %v292 = vadd.s32 %v284, %v290
  %vm293 = vc.u32 %v291, %v287
  %v294 = vsel %vm293, 1, 0
  %v295 = vadd.s32 %v291, %v287
  %v296 = vadd.s32 %v292, %v294
  %v297 = vadd.s32 %v296, %v286
  %v298 = vadd.s32 %v297, %v288
  %v299 = vshrl.u32 %v298, 4
  %v300 = vmul.u32 %v299, 24
  %v301 = vsub.s32 %v277, %v300
  %v302 = vsub.s32 0, %v301
  %v303 = vsel %vm275, %v302, %v301
  %vm304 = vcmp.lt.s32.totalorder %v242, 0
  %v305 = vsub.s32 0, %v242
  %v306 = vsel %vm304, %v305, %v242
  %v307 = vand.u32 %v306, 65535
  %v308 = vshrl.u32 %v306, 16
  %v310 = vmul.u32 %v307, 43691
  %v311 = vmul.u32 %v307, 43690
  %v312 = vmul.u32 %v308, 43691
  %v313 = vmul.u32 %v308, 43690
  %v314 = vshll.u32 %v311, 16
  %v315 = vshrl.u32 %v311, 16
  %v316 = vshll.u32 %v312, 16
  %v317 = vshrl.u32 %v312, 16
  %vm318 = vc.u32 %v310, %v314
  %v319 = vsel %vm318, 1, 0
  %v320 = vadd.s32 %v310, %v314
  %v321 = vadd.s32 %v313, %v319
  %vm322 = vc.u32 %v320, %v316
  %v323 = vsel %vm322, 1, 0
  %v324 = vadd.s32 %v320, %v316
  %v325 = vadd.s32 %v321, %v323
  %v326 = vadd.s32 %v325, %v315
  %v327 = vadd.s32 %v326, %v317
  %v328 = vshrl.u32 %v327, 4
  %v329 = vmul.u32 %v328, 24
  %v330 = vsub.s32 %v306, %v329
  %v331 = vsub.s32 0, %v330
  %v332 = vsel %vm304, %v331, %v330
  %vm333 = vcmp.lt.s32.totalorder %v243, 0
  %v334 = vsub.s32 0, %v243
  %v335 = vsel %vm333, %v334, %v243
  %v336 = vand.u32 %v335, 65535
  %v337 = vshrl.u32 %v335, 16
  %v339 = vmul.u32 %v336, 43691
  %v340 = vmul.u32 %v336, 43690
  %v341 = vmul.u32 %v337, 43691
  %v342 = vmul.u32 %v337, 43690
  %v343 = vshll.u32 %v340, 16
  %v344 = vshrl.u32 %v340, 16
  %v345 = vshll.u32 %v341, 16
  %v346 = vshrl.u32 %v341, 16
  %vm347 = vc.u32 %v339, %v343
  %v348 = vsel %vm347, 1, 0
  %v349 = vadd.s32 %v339, %v343
  %v350 = vadd.s32 %v342, %v348
  %vm351 = vc.u32 %v349, %v345
  %v352 = vsel %vm351, 1, 0
  %v353 = vadd.s32 %v349, %v345
  %v354 = vadd.s32 %v350, %v352
  %v355 = vadd.s32 %v354, %v344
  %v356 = vadd.s32 %v355, %v346
  %v357 = vshrl.u32 %v356, 4
  %v358 = vmul.u32 %v357, 24
  %v359 = vsub.s32 %v335, %v358
  %v360 = vsub.s32 0, %v359
  %v361 = vsel %vm333, %v360, %v359
  %vm362 = vcmp.lt.s32.totalorder %v244, 0
  %v363 = vsub.s32 0, %v244
  %v364 = vsel %vm362, %v363, %v244
  %v365 = vand.u32 %v364, 65535
  %v366 = vshrl.u32 %v364, 16
  %v368 = vmul.u32 %v365, 43691
  %v369 = vmul.u32 %v365, 43690
  %v370 = vmul.u32 %v366, 43691
  %v371 = vmul.u32 %v366, 43690
  %v372 = vshll.u32 %v369, 16
  %v373 = vshrl.u32 %v369, 16
  %v374 = vshll.u32 %v370, 16
  %v375 = vshrl.u32 %v370, 16
  %vm376 = vc.u32 %v368, %v372
  %v377 = vsel %vm376, 1, 0
  %v378 = vadd.s32 %v368, %v372
  %v379 = vadd.s32 %v371, %v377
  %vm380 = vc.u32 %v378, %v374
  %v381 = vsel %vm380, 1, 0
  %v382 = vadd.s32 %v378, %v374
  %v383 = vadd.s32 %v379, %v381
  %v384 = vadd.s32 %v383, %v373
  %v385 = vadd.s32 %v384, %v375
  %v386 = vshrl.u32 %v385, 4
  %v387 = vmul.u32 %v386, 24
  %v388 = vsub.s32 %v364, %v387
  %v389 = vsub.s32 0, %v388
  %v390 = vsel %vm362, %v389, %v388
  %vm391 = vcmp.lt.s32.totalorder %v245, 0
  %v392 = vsub.s32 0, %v245
  %v393 = vsel %vm391, %v392, %v245
  %v394 = vand.u32 %v393, 65535
  %v395 = vshrl.u32 %v393, 16
  %v397 = vmul.u32 %v394, 43691
  %v398 = vmul.u32 %v394, 43690
  %v399 = vmul.u32 %v395, 43691
  %v400 = vmul.u32 %v395, 43690
  %v401 = vshll.u32 %v398, 16
  %v402 = vshrl.u32 %v398, 16
  %v403 = vshll.u32 %v399, 16
  %v404 = vshrl.u32 %v399, 16
  %vm405 = vc.u32 %v397, %v401
  %v406 = vsel %vm405, 1, 0
  %v407 = vadd.s32 %v397, %v401
  %v408 = vadd.s32 %v400, %v406
  %vm409 = vc.u32 %v407, %v403
  %v410 = vsel %vm409, 1, 0
  %v411 = vadd.s32 %v407, %v403
  %v412 = vadd.s32 %v408, %v410
  %v413 = vadd.s32 %v412, %v402
  %v414 = vadd.s32 %v413, %v404
  %v415 = vshrl.u32 %v414, 4
  %v416 = vmul.u32 %v415, 24
  %v417 = vsub.s32 %v393, %v416
  %v418 = vsub.s32 0, %v417
  %v419 = vsel %vm391, %v418, %v417
  %vm420 = vcmp.ge.s32.totalorder %v274, 1
  %vm421 = vcmp.ge.s32.totalorder %v303, 1
  %vm422 = vcmp.ge.s32.totalorder %v332, 1
  %vm423 = vcmp.ge.s32.totalorder %v361, 1
  %vm424 = vcmp.ge.s32.totalorder %v390, 1
  %vm425 = vcmp.ge.s32.totalorder %v419, 1
  %vm426 = vcmp.le.s32.totalorder %v274, 16
  %vm427 = vcmp.le.s32.totalorder %v303, 16
  %vm428 = vcmp.le.s32.totalorder %v332, 16
  %vm429 = vcmp.le.s32.totalorder %v361, 16
  %vm430 = vcmp.le.s32.totalorder %v390, 16
  %vm431 = vcmp.le.s32.totalorder %v419, 16
  %vm432 = vmand %vm420, %vm426
  %vm433 = vmand %vm421, %vm427
  %vm434 = vmand %vm422, %vm428
  %vm435 = vmand %vm423, %vm429
  %vm436 = vmand %vm424, %vm430
  %vm437 = vmand %vm425, %vm431
  %v438 = vsel %vm432, 1, 0
  %v439 = vsel %vm433, 1, 0
  %v440 = vsel %vm434, 1, 0
  %v441 = vsel %vm435, 1, 0
  %v442 = vsel %vm436, 1, 0
  %v443 = vsel %vm437, 1, 0
  %vm444 = vcmp.eq.s32.totalorder %v438, 1
  %vm445 = vcmp.eq.s32.totalorder %v439, 1
  %vm446 = vcmp.eq.s32.totalorder %v440, 1
  %vm447 = vcmp.eq.s32.totalorder %v441, 1
  %vm448 = vcmp.eq.s32.totalorder %v442, 1
  %vm449 = vcmp.eq.s32.totalorder %v443, 1
  %v450 = vsel %vm444, %v222, 0.0
  %v451 = vsel %vm445, %v225, 0.0
  %v452 = vsel %vm446, %v228, 0.0
  %v453 = vsel %vm447, %v231, 0.0
  %v454 = vsel %vm448, %v234, 0.0
  %v455 = vsel %vm449, %v237, 0.0
  %v456 = vtanh.pop %v450
  %v457 = vtanh.pop %v451
  %v458 = vtanh.pop %v452
  %v459 = vtanh.pop %v453
  %v460 = vtanh.pop %v454
  %v461 = vtanh.pop %v455
  %462 = vst.msk [vmem:[#allocation2 + $0x2] sm:$0xff] %vm185, %v456
  %463 = vst.msk [vmem:[#allocation2 + $0xa] sm:$0xff] %vm185, %v457
  %464 = vst.msk [vmem:[#allocation2 + $0x12] sm:$0xff] %vm185, %v458
  %465 = vst.msk [vmem:[#allocation2 + $0x1a] sm:$0xff] %vm185, %v459
  %466 = vst.msk [vmem:[#allocation2 + $0x22] sm:$0xff] %vm185, %v460
  %467 = vst.msk [vmem:[#allocation2 + $0x2a] sm:$0xff] %vm185, %v461
  %v468 = vld [vmem:[#allocation2] ss:$2 sm:$0xff]
  %s469 = scalar_lea.vmem [#allocation2], 16
  %v470 = vld [vmem:[%s469] ss:$2 sm:$0xff]
  %s471 = scalar_lea.vmem [#allocation2], 32
  %v472 = vld [vmem:[%s471] ss:$2 sm:$0xff]
  %s473 = scalar_lea.vmem [#allocation2], 1
  %v474 = vld [vmem:[%s473] ss:$2 sm:$0xff]
  %s475 = scalar_lea.vmem [#allocation2], 17
  %v476 = vld [vmem:[%s475] ss:$2 sm:$0xff]
  %s477 = scalar_lea.vmem [#allocation2], 33
  %v478 = vld [vmem:[%s477] ss:$2 sm:$0xff]
  %s479 = scalar_lea.vmem [#allocation2], 2
  %v480 = vld [vmem:[%s479] ss:$2 sm:$0xff]
  %s481 = scalar_lea.vmem [#allocation2], 18
  %v482 = vld [vmem:[%s481] ss:$2 sm:$0xff]
  %s483 = scalar_lea.vmem [#allocation2], 34
  %v484 = vld [vmem:[%s483] ss:$2 sm:$0xff]
  %s485 = scalar_lea.vmem [#allocation2], 3
  %v486 = vld [vmem:[%s485] ss:$2 sm:$0xff]
  %s487 = scalar_lea.vmem [#allocation2], 19
  %v488 = vld [vmem:[%s487] ss:$2 sm:$0xff]
  %s489 = scalar_lea.vmem [#allocation2], 35
  %v490 = vld [vmem:[%s489] ss:$2 sm:$0xff]
  %494 = vrot.lane.b32.xlu0 %v474, 16
  %v495 = vpop.permute.xlu0 %494
  %496 = vrot.lane.b32.xlu0 %v476, 16
  %v497 = vpop.permute.xlu0 %496
  %498 = vrot.lane.b32.xlu0 %v478, 16
  %v499 = vpop.permute.xlu0 %498
  %506 = vrot.lane.b32.xlu0 %v480, 32
  %v507 = vpop.permute.xlu0 %506
  %508 = vrot.lane.b32.xlu0 %v482, 32
  %v509 = vpop.permute.xlu0 %508
  %510 = vrot.lane.b32.xlu0 %v484, 32
  %v511 = vpop.permute.xlu0 %510
  %518 = vrot.lane.b32.xlu0 %v486, 48
  %v519 = vpop.permute.xlu0 %518
  %520 = vrot.lane.b32.xlu0 %v488, 48
  %v521 = vpop.permute.xlu0 %520
  %522 = vrot.lane.b32.xlu0 %v490, 48
  %v523 = vpop.permute.xlu0 %522
  %v527 = vsel %vm185, %v468, %v495
  %v528 = vsel %vm185, %v470, %v497
  %v529 = vsel %vm185, %v472, %v499
  %vm530 = vcmask 261120
  %v531 = vsel %vm530, %v527, %v507
  %v532 = vsel %vm530, %v528, %v509
  %v533 = vsel %vm530, %v529, %v511
  %vm534 = vcmask 392192
  %v535 = vsel %vm534, %v531, %v519
  %v536 = vsel %vm534, %v532, %v521
  %v537 = vsel %vm534, %v533, %v523
  %v538 = vld [vmem:[%s3] sm:$0xff]
  %v539 = vld [vmem:[%s3 + $0x8] sm:$0xff]
  %v540 = vld [vmem:[%s3 + $0x10] sm:$0xff]
  %v541 = vld [vmem:[%s3 + $0x18] sm:$0xff]
  %v542 = vld [vmem:[%s3 + $0x20] sm:$0xff]
  %v543 = vld [vmem:[%s3 + $0x28] sm:$0xff]
  %v544 = vld [vmem:[%s3 + $0x30] sm:$0xff]
  %v545 = vld [vmem:[%s3 + $0x38] sm:$0xff]
  %v546 = vld [vmem:[%s4] sm:$0x1]
  %v548 = vperm.slane %v546, 0
  %vm550 = vcmask 523264
  %v552 = vsel %vm550, %v535, 0
  %v555 = vsel %vm550, %v536, 0
  %v558 = vsel %vm550, %v537, 0
  %560 = vmatpush.msra.mxu0 0.0
  %561 = vmatpush.msra.mxu0 0.0
  %562 = vmatpush.msra.mxu0 0.0
  %563 = vmatpush.msra.mxu0 0.0
  %564 = vmatpush.msra.mxu0 0.0
  %565 = vmatpush.msra.mxu0 0.0
  %566 = vmatpush.msra.mxu0 0.0
  %567 = vmatpush.msra.mxu0 0.0
  %568 = vmatpush.msra.mxu0 %v545
  %569 = vmatpush.msra.mxu0 %v544
  %570 = vmatpush.msra.mxu0 %v543
  %571 = vmatpush.msra.mxu0 %v542
  %572 = vmatpush.msra.mxu0 %v541
  %573 = vmatpush.msra.mxu0 %v540
  %574 = vmatpush.msra.mxu0 %v539
  %575 = vmatpush.msra.mxu0 %v538
  %576 = vmatmul.f32.gmra.mxu0 %v552
  %v577 = vpop.f32.mrf.mxu0
  %v578 = vadd.f32 %v548, %v577
  %579 = vmatmul.f32.gmra.mxu0 %v555
  %v580 = vpop.f32.mrf.mxu0
  %v581 = vadd.f32 %v548, %v580
  %582 = vmatmul.f32.gmra.mxu0 %v558
  %v583 = vpop.f32.mrf.mxu0
  %v584 = vadd.f32 %v548, %v583
  %585 = vdwg.mxu0
  %vm586 = vcmp.lt.s32.totalorder %v240, 0
  %v587 = vsub.s32 0, %v240
  %v588 = vsel %vm586, %v587, %v240
  %v589 = vand.u32 %v588, 65535
  %v590 = vshrl.u32 %v588, 16
  %v592 = vmul.u32 %v589, 43691
  %v593 = vmul.u32 %v589, 43690
  %v594 = vmul.u32 %v590, 43691
  %v595 = vmul.u32 %v590, 43690
  %v596 = vshll.u32 %v593, 16
  %v597 = vshrl.u32 %v593, 16
  %v598 = vshll.u32 %v594, 16
  %v599 = vshrl.u32 %v594, 16
  %vm600 = vc.u32 %v592, %v596
  %v601 = vsel %vm600, 1, 0
  %v602 = vadd.s32 %v592, %v596
  %v603 = vadd.s32 %v595, %v601
  %vm604 = vc.u32 %v602, %v598
  %v605 = vsel %vm604, 1, 0
  %v606 = vadd.s32 %v602, %v598
  %v607 = vadd.s32 %v603, %v605
  %v608 = vadd.s32 %v607, %v597
  %v609 = vadd.s32 %v608, %v599
  %v610 = vshrl.u32 %v609, 3
  %v611 = vmul.u32 %v610, 12
  %v612 = vsub.s32 %v588, %v611
  %v613 = vsub.s32 0, %v612
  %v614 = vsel %vm586, %v613, %v612
  %vm615 = vcmp.lt.s32.totalorder %v241, 0
  %v616 = vsub.s32 0, %v241
  %v617 = vsel %vm615, %v616, %v241
  %v618 = vand.u32 %v617, 65535
  %v619 = vshrl.u32 %v617, 16
  %v621 = vmul.u32 %v618, 43691
  %v622 = vmul.u32 %v618, 43690
  %v623 = vmul.u32 %v619, 43691
  %v624 = vmul.u32 %v619, 43690
  %v625 = vshll.u32 %v622, 16
  %v626 = vshrl.u32 %v622, 16
  %v627 = vshll.u32 %v623, 16
  %v628 = vshrl.u32 %v623, 16
  %vm629 = vc.u32 %v621, %v625
  %v630 = vsel %vm629, 1, 0
  %v631 = vadd.s32 %v621, %v625
  %v632 = vadd.s32 %v624, %v630
  %vm633 = vc.u32 %v631, %v627
  %v634 = vsel %vm633, 1, 0
  %v635 = vadd.s32 %v631, %v627
  %v636 = vadd.s32 %v632, %v634
  %v637 = vadd.s32 %v636, %v626
  %v638 = vadd.s32 %v637, %v628
  %v639 = vshrl.u32 %v638, 3
  %v640 = vmul.u32 %v639, 12
  %v641 = vsub.s32 %v617, %v640
  %v642 = vsub.s32 0, %v641
  %v643 = vsel %vm615, %v642, %v641
  %vm644 = vcmp.lt.s32.totalorder %v242, 0
  %v645 = vsub.s32 0, %v242
  %v646 = vsel %vm644, %v645, %v242
  %v647 = vand.u32 %v646, 65535
  %v648 = vshrl.u32 %v646, 16
  %v650 = vmul.u32 %v647, 43691
  %v651 = vmul.u32 %v647, 43690
  %v652 = vmul.u32 %v648, 43691
  %v653 = vmul.u32 %v648, 43690
  %v654 = vshll.u32 %v651, 16
  %v655 = vshrl.u32 %v651, 16
  %v656 = vshll.u32 %v652, 16
  %v657 = vshrl.u32 %v652, 16
  %vm658 = vc.u32 %v650, %v654
  %v659 = vsel %vm658, 1, 0
  %v660 = vadd.s32 %v650, %v654
  %v661 = vadd.s32 %v653, %v659
  %vm662 = vc.u32 %v660, %v656
  %v663 = vsel %vm662, 1, 0
  %v664 = vadd.s32 %v660, %v656
  %v665 = vadd.s32 %v661, %v663
  %v666 = vadd.s32 %v665, %v655
  %v667 = vadd.s32 %v666, %v657
  %v668 = vshrl.u32 %v667, 3
  %v669 = vmul.u32 %v668, 12
  %v670 = vsub.s32 %v646, %v669
  %v671 = vsub.s32 0, %v670
  %v672 = vsel %vm644, %v671, %v670
  %vm673 = vcmp.ge.s32.totalorder %v614, 1
  %vm674 = vcmp.ge.s32.totalorder %v643, 1
  %vm675 = vcmp.ge.s32.totalorder %v672, 1
  %vm676 = vcmp.le.s32.totalorder %v614, 8
  %vm677 = vcmp.le.s32.totalorder %v643, 8
  %vm678 = vcmp.le.s32.totalorder %v672, 8
  %vm679 = vmand %vm673, %vm676
  %vm680 = vmand %vm674, %vm677
  %vm681 = vmand %vm675, %vm678
  %v682 = vsel %vm679, 1, 0
  %v683 = vsel %vm680, 1, 0
  %v684 = vsel %vm681, 1, 0
  %vm685 = vcmp.eq.s32.totalorder %v682, 1
  %vm686 = vcmp.eq.s32.totalorder %v683, 1
  %vm687 = vcmp.eq.s32.totalorder %v684, 1
  %v688 = vsel %vm685, %v578, 0.0
  %v689 = vsel %vm686, %v581, 0.0
  %v690 = vsel %vm687, %v584, 0.0
  %v691 = vtanh.pop %v688
  %v692 = vtanh.pop %v689
  %v693 = vtanh.pop %v690
  %694 = vst.msk [vmem:[#allocation3 + $0x2] sm:$0xff] %vm530, %v691
  %695 = vst.msk [vmem:[#allocation3 + $0xa] sm:$0xff] %vm530, %v692
  %696 = vst.msk [vmem:[#allocation3 + $0x12] sm:$0xff] %vm530, %v693
  %v697 = vld [vmem:[#allocation3] ss:$2 sm:$0xff]
  %s698 = scalar_lea.vmem [#allocation3], 16
  %v699 = vld [vmem:[%s698] ss:$2 sm:$0xf]
  %s700 = scalar_lea.vmem [#allocation3], 1
  %v701 = vld [vmem:[%s700] ss:$2 sm:$0xff]
  %s702 = scalar_lea.vmem [#allocation3], 17
  %v703 = vld [vmem:[%s702] ss:$2 sm:$0xf]
  %s704 = scalar_lea.vmem [#allocation3], 2
  %v705 = vld [vmem:[%s704] ss:$2 sm:$0xff]
  %s706 = scalar_lea.vmem [#allocation3], 18
  %v707 = vld [vmem:[%s706] ss:$2 sm:$0xf]
  %710 = vrot.lane.b32.xlu0 %v701, 32
  %v711 = vpop.permute.xlu0 %710
  %712 = vrot.lane.b32.xlu0 %v703, 32
  %v713 = vpop.permute.xlu0 %712
  %718 = vrot.lane.b32.xlu0 %v705, 64
  %v719 = vpop.permute.xlu0 %718
  %720 = vrot.lane.b32.xlu0 %v707, 64
  %v721 = vpop.permute.xlu0 %720
  %v724 = vsel %vm530, %v697, %v711
  %v725 = vsel %vm530, %v699, %v713
  %v726 = vsel %vm550, %v724, %v719
  %v727 = vsel %vm550, %v725, %v721
  %v728 = vld [vmem:[%s5] sm:$0xff]
  %v729 = vld [vmem:[%s5 + $0x8] sm:$0xff]
  %v730 = vld [vmem:[%s5 + $0x10] sm:$0xff]
  %v731 = vld [vmem:[%s5 + $0x18] sm:$0xff]
  %v732 = vld [vmem:[%s5 + $0x20] sm:$0xff]
  %v733 = vld [vmem:[%s5 + $0x28] sm:$0xff]
  %v734 = vld [vmem:[%s5 + $0x30] sm:$0xff]
  %v735 = vld [vmem:[%s5 + $0x38] sm:$0xff]
  %v736 = vld [vmem:[%s5 + $0x40] sm:$0xff]
  %v737 = vld [vmem:[%s5 + $0x48] sm:$0xff]
  %v738 = vld [vmem:[%s5 + $0x50] sm:$0xff]
  %v739 = vld [vmem:[%s5 + $0x58] sm:$0xff]
  %v740 = vld [vmem:[%s6] sm:$0x1]
  %v742 = vperm.slane %v740, 0
  %vm744 = vcmask 785408
  %v746 = vsel %vm744, %v726, 0
  %v749 = vsel %vm744, %v727, 0
  %751 = vmatpush.msra.mxu0 0.0
  %752 = vmatpush.msra.mxu0 0.0
  %753 = vmatpush.msra.mxu0 0.0
  %754 = vmatpush.msra.mxu0 0.0
  %755 = vmatpush.msra.mxu0 %v739
  %756 = vmatpush.msra.mxu0 %v738
  %757 = vmatpush.msra.mxu0 %v737
  %758 = vmatpush.msra.mxu0 %v736
  %759 = vmatpush.msra.mxu0 %v735
  %760 = vmatpush.msra.mxu0 %v734
  %761 = vmatpush.msra.mxu0 %v733
  %762 = vmatpush.msra.mxu0 %v732
  %763 = vmatpush.msra.mxu0 %v731
  %764 = vmatpush.msra.mxu0 %v730
  %765 = vmatpush.msra.mxu0 %v729
  %766 = vmatpush.msra.mxu0 %v728
  %767 = vmatmul.f32.gmra.mxu0 %v746
  %v768 = vpop.f32.mrf.mxu0
  %v769 = vadd.f32 %v742, %v768
  %770 = vmatmul.f32.gmra.mxu0 %v749
  %v771 = vpop.f32.mrf.mxu0
  %v772 = vadd.f32 %v742, %v771
  %773 = vdwg.mxu0
  %vm774 = vcmp.lt.s32.totalorder %v240, 0
  %v775 = vsub.s32 0, %v240
  %v776 = vsel %vm774, %v775, %v240
  %v777 = vand.u32 %v776, 65535
  %v778 = vshrl.u32 %v776, 16
  %v780 = vmul.u32 %v777, 43691
  %v781 = vmul.u32 %v777, 43690
  %v782 = vmul.u32 %v778, 43691
  %v783 = vmul.u32 %v778, 43690
  %v784 = vshll.u32 %v781, 16
  %v785 = vshrl.u32 %v781, 16
  %v786 = vshll.u32 %v782, 16
  %v787 = vshrl.u32 %v782, 16
  %vm788 = vc.u32 %v780, %v784
  %v789 = vsel %vm788, 1, 0
  %v790 = vadd.s32 %v780, %v784
  %v791 = vadd.s32 %v783, %v789
  %vm792 = vc.u32 %v790, %v786
  %v793 = vsel %vm792, 1, 0
  %v794 = vadd.s32 %v790, %v786
  %v795 = vadd.s32 %v791, %v793
  %v796 = vadd.s32 %v795, %v785
  %v797 = vadd.s32 %v796, %v787
  %v798 = vshrl.u32 %v797, 2
  %v799 = vmul.u32 %v798, 6
  %v800 = vsub.s32 %v776, %v799
  %v801 = vsub.s32 0, %v800
  %v802 = vsel %vm774, %v801, %v800
  %vm803 = vcmp.lt.s32.totalorder %v241, 0
  %v804 = vsub.s32 0, %v241
  %v805 = vsel %vm803, %v804, %v241
  %v806 = vand.u32 %v805, 65535
  %v807 = vshrl.u32 %v805, 16
  %v809 = vmul.u32 %v806, 43691
  %v810 = vmul.u32 %v806, 43690
  %v811 = vmul.u32 %v807, 43691
  %v812 = vmul.u32 %v807, 43690
  %v813 = vshll.u32 %v810, 16
  %v814 = vshrl.u32 %v810, 16
  %v815 = vshll.u32 %v811, 16
  %v816 = vshrl.u32 %v811, 16
  %vm817 = vc.u32 %v809, %v813
  %v818 = vsel %vm817, 1, 0
  %v819 = vadd.s32 %v809, %v813
  %v820 = vadd.s32 %v812, %v818
  %vm821 = vc.u32 %v819, %v815
  %v822 = vsel %vm821, 1, 0
  %v823 = vadd.s32 %v819, %v815
  %v824 = vadd.s32 %v820, %v822
  %v825 = vadd.s32 %v824, %v814
  %v826 = vadd.s32 %v825, %v816
  %v827 = vshrl.u32 %v826, 2
  %v828 = vmul.u32 %v827, 6
  %v829 = vsub.s32 %v805, %v828
  %v830 = vsub.s32 0, %v829
  %v831 = vsel %vm803, %v830, %v829
  %vm832 = vcmp.ge.s32.totalorder %v802, 1
  %vm833 = vcmp.ge.s32.totalorder %v831, 1
  %vm834 = vcmp.le.s32.totalorder %v802, 4
  %vm835 = vcmp.le.s32.totalorder %v831, 4
  %vm836 = vmand %vm832, %vm834
  %vm837 = vmand %vm833, %vm835
  %v838 = vsel %vm836, 1, 0
  %v839 = vsel %vm837, 1, 0
  %vm840 = vcmp.eq.s32.totalorder %v838, 1
  %vm841 = vcmp.eq.s32.totalorder %v839, 1
  %v842 = vsel %vm840, %v769, 0.0
  %v843 = vsel %vm841, %v772, 0.0
  %v844 = vtanh.pop %v842
  %v845 = vtanh.pop %v843
  %846 = vst.msk [vmem:[#allocation4 + $0x1] sm:$0xff] %vm530, %v844
  %vm847 = vcmask 257024
  %848 = vst.msk [vmem:[#allocation4 + $0x9] sm:$0xf] %vm847, %v845
  %v849 = vld [vmem:[#allocation4] sm:$0xff]
  %v850 = vld [vmem:[#allocation4 + $0x8] sm:$0xf]
  %v851 = vld [vmem:[#allocation4 + $0x2] sm:$0xff]
  %v852 = vld [vmem:[#allocation4 + $0xa] sm:$0xf]
  %855 = vrot.lane.b32.xlu0 %v844, 32
  %v856 = vpop.permute.xlu0 %855
  %857 = vrot.lane.b32.xlu0 %v845, 32
  %v858 = vpop.permute.xlu0 %857
  %863 = vrot.lane.b32.xlu0 %v851, 64
  %v864 = vpop.permute.xlu0 %863
  %865 = vrot.lane.b32.xlu0 %v852, 64
  %v866 = vpop.permute.xlu0 %865
  %v869 = vsel %vm530, %v849, %v856
  %v870 = vsel %vm530, %v850, %v858
  %v871 = vsel %vm550, %v869, %v864
  %v872 = vsel %vm550, %v870, %v866
  %v873 = vld [vmem:[%s7] sm:$0xff]
  %v874 = vld [vmem:[%s7 + $0x8] sm:$0xff]
  %v875 = vld [vmem:[%s7 + $0x10] sm:$0xff]
  %v876 = vld [vmem:[%s7 + $0x18] sm:$0xff]
  %v877 = vld [vmem:[%s7 + $0x20] sm:$0xff]
  %v878 = vld [vmem:[%s7 + $0x28] sm:$0xff]
  %v879 = vld [vmem:[%s7 + $0x30] sm:$0xff]
  %v880 = vld [vmem:[%s7 + $0x38] sm:$0xff]
  %v881 = vld [vmem:[%s7 + $0x40] sm:$0xff]
  %v882 = vld [vmem:[%s7 + $0x48] sm:$0xff]
  %v883 = vld [vmem:[%s7 + $0x50] sm:$0xff]
  %v884 = vld [vmem:[%s7 + $0x58] sm:$0xff]
  %v886 = vsel %vm744, %v871, 0
  %v889 = vsel %vm744, %v872, 0
  %891 = vmatpush.msra.mxu0 0.0
  %892 = vmatpush.msra.mxu0 0.0
  %893 = vmatpush.msra.mxu0 0.0
  %894 = vmatpush.msra.mxu0 0.0
  %895 = vmatpush.msra.mxu0 %v884
  %896 = vmatpush.msra.mxu0 %v883
  %897 = vmatpush.msra.mxu0 %v882
  %898 = vmatpush.msra.mxu0 %v881
  %899 = vmatpush.msra.mxu0 %v880
  %900 = vmatpush.msra.mxu0 %v879
  %901 = vmatpush.msra.mxu0 %v878
  %902 = vmatpush.msra.mxu0 %v877
  %903 = vmatpush.msra.mxu0 %v876
  %904 = vmatpush.msra.mxu0 %v875
  %905 = vmatpush.msra.mxu0 %v874
  %906 = vmatpush.msra.mxu0 %v873
  %907 = vmatmul.f32.gmra.mxu0 %v886
  %v908 = vpop.f32.mrf.mxu0
  %v909 = vadd.f32 0.0, %v908
  %910 = vmatmul.f32.gmra.mxu0 %v889
  %v911 = vpop.f32.mrf.mxu0
  %v912 = vadd.f32 0.0, %v911
  %913 = vdwg.mxu0
  %v914 = vtanh.pop %v909
  %v915 = vtanh.pop %v912
  %v916 = vld [vmem:[%s8] sm:$0xff]
  %v918 = vsel %vm165, %v914, 0
  %v921 = vsel %vm165, %v915, 0
  %923 = vmatpush.msra.mxu0 0.0
  %924 = vmatpush.msra.mxu0 0.0
  %925 = vmatpush.msra.mxu0 0.0
  %926 = vmatpush.msra.mxu0 0.0
  %927 = vmatpush.msra.mxu0 0.0
  %928 = vmatpush.msra.mxu0 0.0
  %929 = vmatpush.msra.mxu0 0.0
  %930 = vmatpush.msra.mxu0 0.0
  %931 = vmatpush.msra.mxu0 0.0
  %932 = vmatpush.msra.mxu0 0.0
  %933 = vmatpush.msra.mxu0 0.0
  %934 = vmatpush.msra.mxu0 0.0
  %935 = vmatpush.msra.mxu0 0.0
  %936 = vmatpush.msra.mxu0 0.0
  %937 = vmatpush.msra.mxu0 0.0
  %938 = vmatpush.msra.mxu0 %v916
  %939 = vmatmul.f32.gmra.mxu0 %v918
  %v940 = vpop.f32.mrf.mxu0
  %v941 = vadd.f32 0.0, %v940
  %942 = vmatmul.f32.gmra.mxu0 %v921
  %v943 = vpop.f32.mrf.mxu0
  %v944 = vadd.f32 0.0, %v943
  %945 = vdwg.mxu0
  %v946 = vsel %vm840, %v941, 0.0
  %v947 = vsel %vm841, %v944, 0.0
  %v948 = vadd.f32 %v842, %v946
  %v949 = vadd.f32 %v843, %v947
  %v950 = vtanh.pop %v948
  %v951 = vtanh.pop %v949
  %952 = vst.msk [vmem:[#allocation4 + $0x1] sm:$0xff] %vm530, %v950
  %953 = vst.msk [vmem:[#allocation4 + $0x9] sm:$0xf] %vm847, %v951
  %v954 = vld [vmem:[#allocation4] sm:$0xff]
  %v955 = vld [vmem:[#allocation4 + $0x8] sm:$0xf]
  %v956 = vld [vmem:[#allocation4 + $0x2] sm:$0xff]
  %v957 = vld [vmem:[#allocation4 + $0xa] sm:$0xf]
  %960 = vrot.lane.b32.xlu0 %v950, 32
  %v961 = vpop.permute.xlu0 %960
  %962 = vrot.lane.b32.xlu0 %v951, 32
  %v963 = vpop.permute.xlu0 %962
  %968 = vrot.lane.b32.xlu0 %v956, 64
  %v969 = vpop.permute.xlu0 %968
  %970 = vrot.lane.b32.xlu0 %v957, 64
  %v971 = vpop.permute.xlu0 %970
  %v974 = vsel %vm530, %v954, %v961
  %v975 = vsel %vm530, %v955, %v963
  %v976 = vsel %vm550, %v974, %v969
  %v977 = vsel %vm550, %v975, %v971
  %s978 = scalar_lea.vmem %s7, 96
  %v979 = vld [vmem:[%s978] sm:$0xff]
  %v980 = vld [vmem:[%s978 + $0x8] sm:$0xff]
  %v981 = vld [vmem:[%s978 + $0x10] sm:$0xff]
  %v982 = vld [vmem:[%s978 + $0x18] sm:$0xff]
  %v983 = vld [vmem:[%s978 + $0x20] sm:$0xff]
  %v984 = vld [vmem:[%s978 + $0x28] sm:$0xff]
  %v985 = vld [vmem:[%s978 + $0x30] sm:$0xff]
  %v986 = vld [vmem:[%s978 + $0x38] sm:$0xff]
  %v987 = vld [vmem:[%s978 + $0x40] sm:$0xff]
  %v988 = vld [vmem:[%s978 + $0x48] sm:$0xff]
  %v989 = vld [vmem:[%s978 + $0x50] sm:$0xff]
  %v990 = vld [vmem:[%s978 + $0x58] sm:$0xff]
  %v992 = vsel %vm744, %v976, 0
  %v995 = vsel %vm744, %v977, 0
  %997 = vmatpush.msra.mxu0 0.0
  %998 = vmatpush.msra.mxu0 0.0
  %999 = vmatpush.msra.mxu0 0.0
  %1000 = vmatpush.msra.mxu0 0.0
  %1001 = vmatpush.msra.mxu0 %v990
  %1002 = vmatpush.msra.mxu0 %v989
  %1003 = vmatpush.msra.mxu0 %v988
  %1004 = vmatpush.msra.mxu0 %v987
  %1005 = vmatpush.msra.mxu0 %v986
  %1006 = vmatpush.msra.mxu0 %v985
  %1007 = vmatpush.msra.mxu0 %v984
  %1008 = vmatpush.msra.mxu0 %v983
  %1009 = vmatpush.msra.mxu0 %v982
  %1010 = vmatpush.msra.mxu0 %v981
  %1011 = vmatpush.msra.mxu0 %v980
  %1012 = vmatpush.msra.mxu0 %v979
  %1013 = vmatmul.f32.gmra.mxu0 %v992
  %v1014 = vpop.f32.mrf.mxu0
  %v1015 = vadd.f32 0.0, %v1014
  %1016 = vmatmul.f32.gmra.mxu0 %v995
  %v1017 = vpop.f32.mrf.mxu0
  %v1018 = vadd.f32 0.0, %v1017
  %1019 = vdwg.mxu0
  %v1020 = vtanh.pop %v1015
  %v1021 = vtanh.pop %v1018
  %s1022 = scalar_lea.vmem %s8, 8
  %v1023 = vld [vmem:[%s1022] sm:$0xff]
  %v1025 = vsel %vm165, %v1020, 0
  %v1028 = vsel %vm165, %v1021, 0
  %1030 = vmatpush.msra.mxu0 0.0
  %1031 = vmatpush.msra.mxu0 0.0
  %1032 = vmatpush.msra.mxu0 0.0
  %1033 = vmatpush.msra.mxu0 0.0
  %1034 = vmatpush.msra.mxu0 0.0
  %1035 = vmatpush.msra.mxu0 0.0
  %1036 = vmatpush.msra.mxu0 0.0
  %1037 = vmatpush.msra.mxu0 0.0
  %1038 = vmatpush.msra.mxu0 0.0
  %1039 = vmatpush.msra.mxu0 0.0
  %1040 = vmatpush.msra.mxu0 0.0
  %1041 = vmatpush.msra.mxu0 0.0
  %1042 = vmatpush.msra.mxu0 0.0
  %1043 = vmatpush.msra.mxu0 0.0
  %1044 = vmatpush.msra.mxu0 0.0
  %1045 = vmatpush.msra.mxu0 %v1023
  %1046 = vmatmul.f32.gmra.mxu0 %v1025
  %v1047 = vpop.f32.mrf.mxu0
  %v1048 = vadd.f32 0.0, %v1047
  %1049 = vmatmul.f32.gmra.mxu0 %v1028
  %v1050 = vpop.f32.mrf.mxu0
  %v1051 = vadd.f32 0.0, %v1050
  %1052 = vdwg.mxu0
  %v1053 = vsel %vm840, %v1048, 0.0
  %v1054 = vsel %vm841, %v1051, 0.0
  %v1055 = vadd.f32 %v948, %v1053
  %v1056 = vadd.f32 %v949, %v1054
  %v1057 = vtanh.pop %v1055
  %v1058 = vtanh.pop %v1056
  %1059 = vst.msk [vmem:[%s9] sm:$0xff] %vm530, %v1057
  %1060 = vst.msk [vmem:[%s9 + $0x8] sm:$0xf] %vm847, %v1058
  // Predicated region
  $region38: #{encoder_forward_pallas.1} parent=0 // pred_check
    _
  $region39: #{encoder_forward_pallas.1} parent=0 // pred_check_branch
    %1062 = sbr.rel (0) target = $region41
  $region40: #{encoder_forward_pallas.1} parent=0 // pred_region
    _
  $region41: #{encoder_forward_pallas.1} parent=0 // pred_fallthru
    _
  // Predicated region
  $region42: #{encoder_forward_pallas.1} parent=0 // pred_check
    _
  $region43: #{encoder_forward_pallas.1} parent=0 // pred_check_branch
    %1064 = sbr.rel (0) target = $region45
  $region44: #{encoder_forward_pallas.1} parent=0 // pred_region
    _
  $region45: #{encoder_forward_pallas.1} parent=0 // pred_fallthru
    _

</llo_original>
